<compile_context>
chip_gen: v7x
topology: tpu7x:2x2x1
jax: 0.10.0
libtpu: 0.0.40
codegen_flags: <defaults>
</compile_context>

<pallas_src>
import jax
import jax.numpy as jnp
from jax.experimental import pallas as pl
from jax.experimental.pallas import tpu as pltpu


def _gcn_kernel(x_ref, wbd_ref, adj_ref, b_ref, o_ref):
    # x_ref:   (N, TB*F)      lane-dense slab, column t*F + f holds x[n, t, f]
    # wbd_ref: (TB*F, TB*Fo)  block-diagonal I_TB (x) W
    # adj_ref: (N, N)
    # b_ref:   (1, TB*Fo)     bias tiled TB times
    # o_ref:   (N, TB*Fo)
    support = jnp.dot(x_ref[...], wbd_ref[...],
                      preferred_element_type=jnp.float32)      # (N, TB*Fo)
    out = jnp.dot(adj_ref[...], support,
                  preferred_element_type=jnp.float32)          # (N, TB*Fo)
    o_ref[...] = (out + b_ref[...]).astype(o_ref.dtype)


def graph_convolution(x, adj, weight, bias=None):
    """Pallas GCN layer: (adj @ (x @ W)) + b, batched over (B, S)."""
    B, S, N, F = x.shape
    Fo = weight.shape[1]
    BS = B * S
    if bias is None:
        bias = jnp.zeros((Fo,), dtype=x.dtype)

    # 2 parallel grid steps when block shapes stay (8,128)-legal (v7x dual TC),
    # otherwise a single full-extent step (always legal).
    G = 1
    if BS % 2 == 0:
        tb = BS // 2
        if (tb * F) % 128 == 0 and (tb * Fo) % 128 == 0:
            G = 2
    TB = BS // G

    # Wrapper-side layout plumbing (tiny XLA ops, outside the kernel):
    # x: (B,S,N,F) -> N-major lane-dense slab (N, BS*F)
    x_wide = jnp.transpose(x.reshape(BS, N, F), (1, 0, 2)).reshape(N, BS * F)
    # Block-diagonal weight so the first matmul preserves the (t, f) packing.
    w_bd = jnp.kron(jnp.eye(TB, dtype=weight.dtype), weight)    # (TB*F, TB*Fo)
    bias_wide = jnp.tile(bias, TB).reshape(1, TB * Fo)

    itemsize = jnp.dtype(x.dtype).itemsize
    flops = 2 * BS * N * F * Fo + 2 * BS * N * N * Fo
    bytes_accessed = int(
        (x.size + adj.size + weight.size + bias.size + BS * N * Fo) * itemsize)

    out_wide = pl.pallas_call(
        _gcn_kernel,
        out_shape=jax.ShapeDtypeStruct((N, BS * Fo), x.dtype),
        grid_spec=pl.GridSpec(
            grid=(G,),
            in_specs=[
                pl.BlockSpec((N, TB * F), lambda g: (0, g)),        # x slab
                pl.BlockSpec((TB * F, TB * Fo), lambda g: (0, 0)),  # I (x) W
                pl.BlockSpec((N, N), lambda g: (0, 0)),             # adj
                pl.BlockSpec((1, TB * Fo), lambda g: (0, 0)),       # bias
            ],
            out_specs=pl.BlockSpec((N, TB * Fo), lambda g: (0, g)),
        ),
        compiler_params=pltpu.CompilerParams(
            dimension_semantics=("parallel",)),
        cost_estimate=pl.CostEstimate(flops=flops, transcendentals=0,
                                      bytes_accessed=bytes_accessed),
    )(x_wide, w_bd, adj, bias_wide)

    # (N, BS*Fo) -> (B, S, N, Fo)
    out = jnp.transpose(out_wide.reshape(N, BS, Fo), (1, 0, 2))
    return out.reshape(B, S, N, Fo)


if __name__ == "__main__":
    key = jax.random.PRNGKey(0)
    kx, kadj, kw, kb = jax.random.split(key, 4)

    # Small shapes consistent with the module's forward: B x S x N x F
    B, S, N, F, Fo = 2, 8, 16, 32, 32

    x = jax.random.normal(kx, (B, S, N, F), dtype=jnp.float32)
    adj = jax.random.uniform(kadj, (N, N), dtype=jnp.float32)

    # Deterministic parameter init mirroring init_parameters():
    # uniform(-std, std) with std = 1/sqrt(out_features)
    std = 1.0 / jnp.sqrt(jnp.float32(Fo))
    weight = jax.random.uniform(kw, (F, Fo), minval=-std, maxval=std,
                                dtype=jnp.float32)
    bias = jax.random.uniform(kb, (Fo,), minval=-std, maxval=std,
                              dtype=jnp.float32)

    out = graph_convolution(x, adj, weight, bias)
    out = jax.block_until_ready(out)

    # Reference check in plain JAX (same math as the PyTorch forward)
    ref = jnp.matmul(adj, jnp.matmul(x, weight)) + bias
    assert out.shape == (B, S, N, Fo)
    assert jnp.allclose(out, ref, atol=1e-5, rtol=1e-5)

    print("KERNEL_OK")
</pallas_src>

<mosaic_0001>
module attributes {stable_mosaic.version = 11 : i64} {
  func.func @_gcn_kernel(%arg0: i32, %arg1: memref<16x256xf32, #tpu.memory_space<vmem>>, %arg2: memref<256x256xf32, #tpu.memory_space<vmem>>, %arg3: memref<16x16xf32, #tpu.memory_space<vmem>>, %arg4: memref<1x256xf32, #tpu.memory_space<vmem>>, %arg5: memref<16x256xf32, #tpu.memory_space<vmem>>) attributes {dimension_semantics = [#tpu.dimension_semantics<parallel>], iteration_bounds = array<i64: 2>, scalar_prefetch = 0 : i64, scratch_operands = 0 : i64, tpu.core_type = #tpu.core_type<tc>, window_params = [{transform_indices = @transform_0, window_bounds = array<i64: 16, 256>}, {pipeline_mode = #tpu.pipeline_mode<synchronous>, transform_indices = @transform_1, window_bounds = array<i64: 256, 256>}, {pipeline_mode = #tpu.pipeline_mode<synchronous>, transform_indices = @transform_2, window_bounds = array<i64: 16, 16>}, {pipeline_mode = #tpu.pipeline_mode<synchronous>, transform_indices = @transform_3, window_bounds = array<i64: 1, 256>}, {transform_indices = @transform_4, window_bounds = array<i64: 16, 256>}]} {
    %c0 = arith.constant 0 : index
    %c0_0 = arith.constant 0 : index
    %0 = vector.load %arg1[%c0, %c0_0] : memref<16x256xf32, #tpu.memory_space<vmem>>, vector<16x256xf32>
    %c0_1 = arith.constant 0 : index
    %c0_2 = arith.constant 0 : index
    %1 = vector.load %arg2[%c0_1, %c0_2] : memref<256x256xf32, #tpu.memory_space<vmem>>, vector<256x256xf32>
    %cst = arith.constant dense<0.000000e+00> : vector<16x256xf32>
    %2 = tpu.matmul %0, %1, %cst {dimension_numbers = #tpu.dot_dimension_numbers<[1], [0], [0], [1], [0, 0, 1, 1], [], []>} : vector<16x256xf32>, vector<256x256xf32>, vector<16x256xf32> -> vector<16x256xf32>
    %c0_3 = arith.constant 0 : index
    %c0_4 = arith.constant 0 : index
    %3 = vector.load %arg3[%c0_3, %c0_4] : memref<16x16xf32, #tpu.memory_space<vmem>>, vector<16x16xf32>
    %cst_5 = arith.constant dense<0.000000e+00> : vector<16x256xf32>
    %4 = tpu.matmul %3, %2, %cst_5 {dimension_numbers = #tpu.dot_dimension_numbers<[1], [0], [0], [1], [0, 0, 1, 1], [], []>} : vector<16x16xf32>, vector<16x256xf32>, vector<16x256xf32> -> vector<16x256xf32>
    %c0_6 = arith.constant 0 : index
    %c0_7 = arith.constant 0 : index
    %5 = vector.load %arg4[%c0_6, %c0_7] : memref<1x256xf32, #tpu.memory_space<vmem>>, vector<1x256xf32>
    %6 = vector.broadcast %5 : vector<1x256xf32> to vector<16x256xf32>
    %7 = arith.addf %4, %6 : vector<16x256xf32>
    %c0_8 = arith.constant 0 : index
    %c0_9 = arith.constant 0 : index
    %8 = vector.load %arg5[%c0_8, %c0_9] : memref<16x256xf32, #tpu.memory_space<vmem>>, vector<16x256xf32>
    tpu.vector_store %arg5[%c0_8, %c0_9], %7 {strides = array<i32>} : memref<16x256xf32, #tpu.memory_space<vmem>>, vector<16x256xf32>,
    return
  }
  func.func @transform_0(%arg0: i32) -> (i32, i32) {
    %c0_i32 = arith.constant 0 : i32
    %c0_i32_0 = arith.constant 0 : i32
    return %c0_i32, %arg0 : i32, i32
  }
  func.func @transform_1(%arg0: i32) -> (i32, i32) {
    %c0_i32 = arith.constant 0 : i32
    %c0_i32_0 = arith.constant 0 : i32
    %c0_i32_1 = arith.constant 0 : i32
    return %c0_i32, %c0_i32_0 : i32, i32
  }
  func.func @transform_2(%arg0: i32) -> (i32, i32) {
    %c0_i32 = arith.constant 0 : i32
    %c0_i32_0 = arith.constant 0 : i32
    %c0_i32_1 = arith.constant 0 : i32
    return %c0_i32, %c0_i32_0 : i32, i32
  }
  func.func @transform_3(%arg0: i32) -> (i32, i32) {
    %c0_i32 = arith.constant 0 : i32
    %c0_i32_0 = arith.constant 0 : i32
    %c0_i32_1 = arith.constant 0 : i32
    return %c0_i32, %c0_i32_0 : i32, i32
  }
  func.func @transform_4(%arg0: i32) -> (i32, i32) {
    %c0_i32 = arith.constant 0 : i32
    %c0_i32_0 = arith.constant 0 : i32
    return %c0_i32, %arg0 : i32, i32
  }
}

</mosaic_0001>

<llo_original>
// kernel: tpu_custom_call.1
$region0: #{tpu_custom_call.1}
  #allocation0 [shape = 'u32[]', space=smem, size = 0x4, offset = 0x4, fixed_abs, tag = 'smem constant byte address 0x4 - core index']
  #allocation1 [shape = 'u32[144,128]{1,0:T(1,128)}', space=vmem, size = 0x12000, scoped, tag = 'internal scratch']
  %s0 = inlined_call_operand.hbm [shape: f32[16,512], index: 0, kind: input, shape index: {}]
  %s1 = inlined_call_operand.hbm [shape: f32[256,256], index: 1, kind: input, shape index: {}]
  %s2 = inlined_call_operand.hbm [shape: f32[16,16], index: 2, kind: input, shape index: {}]
  %s3 = inlined_call_operand.vmem [shape: f32[1,256], index: 3, kind: input, shape index: {}]
  %s4 = inlined_call_operand.hbm [shape: f32[16,512], index: 4, kind: output, shape index: {}]
  %s5 = sld [smem:[#allocation0]]
  $region61: #{tpu_custom_call.1} parent=0
    _
  %s7 = ssub.s32 1, %s5
  %s8 = scalar_select 0, %s7, %s5
  $region1: #{tpu_custom_call.1} parent=0
    #allocation2 [shape = 'u8[32768]{0}', space=vmem, size = 0x8000, scoped, tag = 'input window, operand 0']
    #allocation3 [shape = 's32[2]{0}', space=sflag, size = 0x8, scoped, tag = 'scoped memory for tpu_custom_call.1']
    #allocation4 [shape = 's32[2]{0}', space=sflag, size = 0x8, scoped, tag = 'scoped memory for tpu_custom_call.1']
    #allocation5 [shape = 'u8[262144]{0}', space=vmem, size = 0x40000, scoped, tag = 'input window, operand 1, single buffered']
    #allocation6 [shape = 's32[1]{0}', space=sflag, size = 0x4, scoped, tag = 'scoped memory for tpu_custom_call.1']
    #allocation7 [shape = 'u8[8192]{0}', space=vmem, size = 0x2000, scoped, tag = 'input window, operand 2, single buffered']
    #allocation8 [shape = 'u8[32768]{0}', space=vmem, size = 0x8000, scoped, tag = 'output window, operand 0']
    %9 = vsyncpa [#allocation3], 0
    %s10 = scalar_lea.sflag [#allocation3], 1
    %11 = vsyncpa %s10, 0
    %12 = vsyncpa [#allocation6], 0
    %13 = vsyncpa [#allocation4], 0
    %s14 = scalar_lea.sflag [#allocation4], 1
    %15 = vsyncpa %s14, 0
    loop: start=0, step=1, limit=4
    $region2: #{tpu_custom_call.1} parent=1 // loop_pre_header
      _
    $region3: #{tpu_custom_call.1} parent=1 // loop_header
      %s17 = sphi 0, %s21
      %p18 = scmp.ge.s32.totalorder %s17, 4
      %s27 = sphi 0, %s29
      %s30 = sphi 0, %s27
      %s31 = sphi 0, %s30
      %s47 = sphi 0, %s31
      %s51 = sphi 0, %s51
      %s53 = sphi 0, %s51
      %s54 = sphi 0, %s53
      %s68 = sphi 0, %s54
      %s72 = sphi 0, %s72
      %s74 = sphi 0, %s72
      %s75 = sphi 0, %s74
      %s89 = sphi 0, %s75
      %s93 = sphi 0, %s93
      %s95 = sphi 0, %s93
      %s96 = sphi 0, %s95
      %s110 = sphi 0, %s96
      %s116 = sphi 0, %s118
      %s119 = sphi 0, %s116
      %s120 = sphi 0, %s119
      %s136 = sphi 0, %s120
    $region4: #{tpu_custom_call.1} parent=1 // loop_header_branch
      %20 = sbr.rel (%p18) target = $region8
    $region5: #{tpu_custom_call.1} parent=1 // loop_body
      %s22 = ssub.s32 %s17, 1
      %s23 = ssub.s32 %s17, 2
      %s24 = sadd.s32 %s17, 1
      %s25 = ssub.s32 %s17, %s24
      %p26 = scmp.eq.s32.totalorder %s25, 0
      %s28 = sadd.s32 %s27, 1
      %s29 = scalar_select %p26, %s27, %s28
      %p32 = pneg %p26
      %p33 = scmp.eq.s32.totalorder %s17, 1
      %p34 = por %p32, %p33
      %p35 = scmp.ne.s32.totalorder %s27, %s30
      %p36 = scmp.eq.s32.totalorder %s17, 0
      %p37 = por %p35, %p36
      %p38 = scmp.ne.s32.totalorder %s27, %s30
      %p39 = scmp.eq.s32.totalorder %s22, 1
      %p40 = por %p38, %p39
      %p41 = scmp.ne.s32.totalorder %s30, %s31
      %p42 = scmp.eq.s32.totalorder %s22, 0
      %p43 = por %p41, %p42
      %p44 = scmp.ne.s32.totalorder %s30, %s31
      %p45 = scmp.eq.s32.totalorder %s23, 1
      %p46 = por %p44, %p45
      %p48 = scmp.ne.s32.totalorder %s31, %s47
      %p49 = scmp.eq.s32.totalorder %s23, 0
      %p50 = por %p48, %p49
      %s52 = sadd.s32 %s51, 1
      %p55 = scmp.eq.s32.totalorder %s17, 1
      %p56 = scmp.ne.s32.totalorder %s51, %s53
      %p57 = scmp.eq.s32.totalorder %s17, 0
      %p58 = por %p56, %p57
      %p59 = scmp.ne.s32.totalorder %s51, %s53
      %p60 = scmp.eq.s32.totalorder %s22, 1
      %p61 = por %p59, %p60
      %p62 = scmp.ne.s32.totalorder %s53, %s54
      %p63 = scmp.eq.s32.totalorder %s22, 0
      %p64 = por %p62, %p63
      %p65 = scmp.ne.s32.totalorder %s53, %s54
      %p66 = scmp.eq.s32.totalorder %s23, 1
      %p67 = por %p65, %p66
      %p69 = scmp.ne.s32.totalorder %s54, %s68
      %p70 = scmp.eq.s32.totalorder %s23, 0
      %p71 = por %p69, %p70
      %s73 = sadd.s32 %s72, 1
      %p76 = scmp.eq.s32.totalorder %s17, 1
      %p77 = scmp.ne.s32.totalorder %s72, %s74
      %p78 = scmp.eq.s32.totalorder %s17, 0
      %p79 = por %p77, %p78
      %p80 = scmp.ne.s32.totalorder %s72, %s74
      %p81 = scmp.eq.s32.totalorder %s22, 1
      %p82 = por %p80, %p81
      %p83 = scmp.ne.s32.totalorder %s74, %s75
      %p84 = scmp.eq.s32.totalorder %s22, 0
      %p85 = por %p83, %p84
      %p86 = scmp.ne.s32.totalorder %s74, %s75
      %p87 = scmp.eq.s32.totalorder %s23, 1
      %p88 = por %p86, %p87
      %p90 = scmp.ne.s32.totalorder %s75, %s89
      %p91 = scmp.eq.s32.totalorder %s23, 0
      %p92 = por %p90, %p91
      %s94 = sadd.s32 %s93, 1
      %p97 = scmp.eq.s32.totalorder %s17, 1
      %p98 = scmp.ne.s32.totalorder %s93, %s95
      %p99 = scmp.eq.s32.totalorder %s17, 0
      %p100 = por %p98, %p99
      %p101 = scmp.ne.s32.totalorder %s93, %s95
      %p102 = scmp.eq.s32.totalorder %s22, 1
      %p103 = por %p101, %p102
      %p104 = scmp.ne.s32.totalorder %s95, %s96
      %p105 = scmp.eq.s32.totalorder %s22, 0
      %p106 = por %p104, %p105
      %p107 = scmp.ne.s32.totalorder %s95, %s96
      %p108 = scmp.eq.s32.totalorder %s23, 1
      %p109 = por %p107, %p108
      %p111 = scmp.ne.s32.totalorder %s96, %s110
      %p112 = scmp.eq.s32.totalorder %s23, 0
      %p113 = por %p111, %p112
      %s114 = ssub.s32 %s17, %s24
      %p115 = scmp.eq.s32.totalorder %s114, 0
      %s117 = sadd.s32 %s116, 1
      %s118 = scalar_select %p115, %s116, %s117
      %p121 = pneg %p115
      %p122 = scmp.eq.s32.totalorder %s17, 1
      %p123 = por %p121, %p122
      %p124 = scmp.ne.s32.totalorder %s116, %s119
      %p125 = scmp.eq.s32.totalorder %s17, 0
      %p126 = por %p124, %p125
      %p127 = scmp.ne.s32.totalorder %s116, %s119
      %p128 = scmp.eq.s32.totalorder %s22, 1
      %p129 = por %p127, %p128
      %p130 = scmp.ne.s32.totalorder %s119, %s120
      %p131 = scmp.eq.s32.totalorder %s22, 0
      %p132 = por %p130, %p131
      %p133 = scmp.ne.s32.totalorder %s119, %s120
      %p134 = scmp.eq.s32.totalorder %s23, 1
      %p135 = por %p133, %p134
      %p137 = scmp.ne.s32.totalorder %s120, %s136
      %p138 = scmp.eq.s32.totalorder %s23, 0
      %p139 = por %p137, %p138
      %p140 = scmp.le.s32.totalorder 1, %s17
      %p141 = scmp.lt.s32.totalorder %s17, 3
      %p142 = pnand %p140, %p141
      %p143 = pneg %p142
      // Predicated region
      $region9: #{tpu_custom_call.1} parent=5 // pred_check
        _
      $region10: #{tpu_custom_call.1} parent=5 // pred_check_branch
        %145 = sbr.rel (%p142) target = $region12
      $region11: #{tpu_custom_call.1} parent=5 // pred_region
        %s146 = ssub.s32 %s17, 1
        // Predicated region
        $region13: #{tpu_custom_call.1} parent=11 // pred_check
          %p147 = pneg %p64
        $region14: #{tpu_custom_call.1} parent=11 // pred_check_branch
          %149 = sbr.rel (%p147) target = $region16
        $region15: #{tpu_custom_call.1} parent=11 // pred_region
          %s151 = ssub.s32 8192, 8192
          %152 = vsyncadd [#allocation6], %s151
          %s153 = sshll.u32 [#allocation5], 4
          %s154 = int_to_ptr.vmem [resolvable:$true] %s153
          %159 = dma.hbm_to_vmem [thread:$0]  %s1, 8192, %s154, [#allocation6], 256, 256, 16
        $region16: #{tpu_custom_call.1} parent=11 // pred_fallthru
          _
        // Predicated region
        $region17: #{tpu_custom_call.1} parent=11 // pred_check
          %p160 = pneg %p85
        $region18: #{tpu_custom_call.1} parent=11 // pred_check_branch
          %162 = sbr.rel (%p160) target = $region20
        $region19: #{tpu_custom_call.1} parent=11 // pred_region
          %s164 = ssub.s32 256, 256
          %165 = vsyncadd [#allocation6], %s164
          %s166 = sshll.u32 [#allocation7], 4
          %s167 = int_to_ptr.vmem [resolvable:$true] %s166
          %172 = dma.hbm_to_vmem [thread:$0]  %s2, 256, %s167, [#allocation6], 128, 128, 8
        $region20: #{tpu_custom_call.1} parent=11 // pred_fallthru
          _
        // Predicated region
        $region21: #{tpu_custom_call.1} parent=11 // pred_check
          %p173 = pneg %p106
        $region22: #{tpu_custom_call.1} parent=11 // pred_check_branch
          %175 = sbr.rel (%p173) target = $region24
        $region23: #{tpu_custom_call.1} parent=11 // pred_region
          _
        $region24: #{tpu_custom_call.1} parent=11 // pred_fallthru
          _
      $region12: #{tpu_custom_call.1} parent=5 // pred_fallthru
        _
      %p176 = scmp.lt.s32.totalorder %s17, 2
      // Predicated region
      $region25: #{tpu_custom_call.1} parent=5 // pred_check
        %p177 = pneg %p176
      $region26: #{tpu_custom_call.1} parent=5 // pred_check_branch
        %179 = sbr.rel (%p177) target = $region28
      $region27: #{tpu_custom_call.1} parent=5 // pred_region
        // Predicated region
        $region29: #{tpu_custom_call.1} parent=27 // pred_check
          %p180 = pneg %p37
        $region30: #{tpu_custom_call.1} parent=27 // pred_check_branch
          %182 = sbr.rel (%p180) target = $region32
        $region31: #{tpu_custom_call.1} parent=27 // pred_region
          %s183 = sand.u32 %s27, 1
          %s184 = scalar_lea.sflag [#allocation3], %s183
          %s185 = sand.u32 %s27, 1
          %s186 = smul.addr %s185, 32
          %s187 = scalar_lea.vmem [#allocation2], %s186
          %s188 = smul.u32 2, %s17
          %s190 = ssub.s32 512, 512
          %191 = vsyncadd %s184, %s190
          %s192 = smul.addr %s188, 128
          %s193 = scalar_lea.hbm %s0, %s192
          %s194 = sshll.u32 %s187, 4
          %s195 = int_to_ptr.vmem [resolvable:$true] %s194
          %200 = dma.hbm_to_vmem [thread:$0]  %s193, 512, %s195, %s184, 512, 256, 16
        $region32: #{tpu_custom_call.1} parent=27 // pred_fallthru
          _
      $region28: #{tpu_custom_call.1} parent=5 // pred_fallthru
        _
      %p201 = scmp.le.s32.totalorder 1, %s17
      %p202 = scmp.lt.s32.totalorder %s17, 3
      %p203 = pnand %p201, %p202
      %p204 = pneg %p203
      // Predicated region
      $region33: #{tpu_custom_call.1} parent=5 // pred_check
        _
      $region34: #{tpu_custom_call.1} parent=5 // pred_check_branch
        %206 = sbr.rel (%p203) target = $region36
      $region35: #{tpu_custom_call.1} parent=5 // pred_region
        %s207 = ssub.s32 %s17, 1
        %s208 = sand.u32 %s30, 1
        %s209 = scalar_lea.sflag [#allocation3], %s208
        %s210 = sand.u32 %s30, 1
        %s211 = smul.addr %s210, 32
        %s212 = scalar_lea.vmem [#allocation2], %s211
        // Predicated region
        $region37: #{tpu_custom_call.1} parent=35 // pred_check
          %p213 = pneg %p43
        $region38: #{tpu_custom_call.1} parent=35 // pred_check_branch
          %215 = sbr.rel (%p213) target = $region40
        $region39: #{tpu_custom_call.1} parent=35 // pred_region
          %216 = dma.done %s209, 512
        $region40: #{tpu_custom_call.1} parent=35 // pred_fallthru
          _
        // Predicated region
        $region41: #{tpu_custom_call.1} parent=35 // pred_check
          %p217 = pneg %p64
        $region42: #{tpu_custom_call.1} parent=35 // pred_check_branch
          %219 = sbr.rel (%p217) target = $region44
        $region43: #{tpu_custom_call.1} parent=35 // pred_region
          %220 = dma.done [#allocation6], 8192
        $region44: #{tpu_custom_call.1} parent=35 // pred_fallthru
          _
        // Predicated region
        $region45: #{tpu_custom_call.1} parent=35 // pred_check
          %p221 = pneg %p85
        $region46: #{tpu_custom_call.1} parent=35 // pred_check_branch
          %223 = sbr.rel (%p221) target = $region48
        $region47: #{tpu_custom_call.1} parent=35 // pred_region
          %224 = dma.done [#allocation6], 256
        $region48: #{tpu_custom_call.1} parent=35 // pred_fallthru
          _
        %s225 = sand.u32 %s30, 1
        %s226 = scalar_lea.sflag [#allocation3], %s225
        %s227 = sand.u32 %s30, 1
        %s228 = smul.addr %s227, 32
        %s229 = scalar_lea.vmem [#allocation2], %s228
        %p230 = pneg %p43
        %p231 = pneg %p40
        %p232 = pneg %p64
        %p233 = pneg %p61
        %p234 = pneg %p85
        %p235 = pneg %p82
        %p236 = pneg %p106
        %p237 = pneg %p103
        %p238 = pneg %p132
        %p239 = pneg %p129
        %s240 = sand.u32 %s119, 1
        %s241 = scalar_lea.sflag [#allocation4], %s240
        %s242 = sand.u32 %s119, 1
        %s243 = smul.addr %s242, 32
        %s244 = scalar_lea.vmem [#allocation8], %s243
        %s245 = smul.u32 2, %s22
        %s246 = smul.u32 2, %s22
        %v247 = vld [vmem:[%s212] sm:$0xff]
        %v248 = vld [vmem:[%s212 + $0x8] sm:$0xff]
        %v249 = vld [vmem:[%s212 + $0x10] sm:$0xff]
        %v250 = vld [vmem:[%s212 + $0x18] sm:$0xff]
        %v251 = vld [vmem:[#allocation5] sm:$0xff]
        %v252 = vld [vmem:[#allocation5 + $0x8] sm:$0xff]
        %v253 = vld [vmem:[#allocation5 + $0x10] sm:$0xff]
        %v254 = vld [vmem:[#allocation5 + $0x18] sm:$0xff]
        %v255 = vld [vmem:[#allocation5 + $0x20] sm:$0xff]
        %v256 = vld [vmem:[#allocation5 + $0x28] sm:$0xff]
        %v257 = vld [vmem:[#allocation5 + $0x30] sm:$0xff]
        %v258 = vld [vmem:[#allocation5 + $0x38] sm:$0xff]
        %v259 = vld [vmem:[#allocation5 + $0x40] sm:$0xff]
        %v260 = vld [vmem:[#allocation5 + $0x48] sm:$0xff]
        %v261 = vld [vmem:[#allocation5 + $0x50] sm:$0xff]
        %v262 = vld [vmem:[#allocation5 + $0x58] sm:$0xff]
        %v263 = vld [vmem:[#allocation5 + $0x60] sm:$0xff]
        %v264 = vld [vmem:[#allocation5 + $0x68] sm:$0xff]
        %v265 = vld [vmem:[#allocation5 + $0x70] sm:$0xff]
        %v266 = vld [vmem:[#allocation5 + $0x78] sm:$0xff]
        %v267 = vld [vmem:[#allocation5 + $0x80] sm:$0xff]
        %v268 = vld [vmem:[#allocation5 + $0x88] sm:$0xff]
        %v269 = vld [vmem:[#allocation5 + $0x90] sm:$0xff]
        %v270 = vld [vmem:[#allocation5 + $0x98] sm:$0xff]
        %v271 = vld [vmem:[#allocation5 + $0xa0] sm:$0xff]
        %v272 = vld [vmem:[#allocation5 + $0xa8] sm:$0xff]
        %v273 = vld [vmem:[#allocation5 + $0xb0] sm:$0xff]
        %v274 = vld [vmem:[#allocation5 + $0xb8] sm:$0xff]
        %v275 = vld [vmem:[#allocation5 + $0xc0] sm:$0xff]
        %v276 = vld [vmem:[#allocation5 + $0xc8] sm:$0xff]
        %v277 = vld [vmem:[#allocation5 + $0xd0] sm:$0xff]
        %v278 = vld [vmem:[#allocation5 + $0xd8] sm:$0xff]
        %v279 = vld [vmem:[#allocation5 + $0xe0] sm:$0xff]
        %v280 = vld [vmem:[#allocation5 + $0xe8] sm:$0xff]
        %v281 = vld [vmem:[#allocation5 + $0xf0] sm:$0xff]
        %v282 = vld [vmem:[#allocation5 + $0xf8] sm:$0xff]
        %v283 = vld [vmem:[#allocation5 + $0x100] sm:$0xff]
        %v284 = vld [vmem:[#allocation5 + $0x108] sm:$0xff]
        %v285 = vld [vmem:[#allocation5 + $0x110] sm:$0xff]
        %v286 = vld [vmem:[#allocation5 + $0x118] sm:$0xff]
        %v287 = vld [vmem:[#allocation5 + $0x120] sm:$0xff]
        %v288 = vld [vmem:[#allocation5 + $0x128] sm:$0xff]
        %v289 = vld [vmem:[#allocation5 + $0x130] sm:$0xff]
        %v290 = vld [vmem:[#allocation5 + $0x138] sm:$0xff]
        %v291 = vld [vmem:[#allocation5 + $0x140] sm:$0xff]
        %v292 = vld [vmem:[#allocation5 + $0x148] sm:$0xff]
        %v293 = vld [vmem:[#allocation5 + $0x150] sm:$0xff]
        %v294 = vld [vmem:[#allocation5 + $0x158] sm:$0xff]
        %v295 = vld [vmem:[#allocation5 + $0x160] sm:$0xff]
        %v296 = vld [vmem:[#allocation5 + $0x168] sm:$0xff]
        %v297 = vld [vmem:[#allocation5 + $0x170] sm:$0xff]
        %v298 = vld [vmem:[#allocation5 + $0x178] sm:$0xff]
        %v299 = vld [vmem:[#allocation5 + $0x180] sm:$0xff]
        %v300 = vld [vmem:[#allocation5 + $0x188] sm:$0xff]
        %v301 = vld [vmem:[#allocation5 + $0x190] sm:$0xff]
        %v302 = vld [vmem:[#allocation5 + $0x198] sm:$0xff]
        %v303 = vld [vmem:[#allocation5 + $0x1a0] sm:$0xff]
        %v304 = vld [vmem:[#allocation5 + $0x1a8] sm:$0xff]
        %v305 = vld [vmem:[#allocation5 + $0x1b0] sm:$0xff]
        %v306 = vld [vmem:[#allocation5 + $0x1b8] sm:$0xff]
        %v307 = vld [vmem:[#allocation5 + $0x1c0] sm:$0xff]
        %v308 = vld [vmem:[#allocation5 + $0x1c8] sm:$0xff]
        %v309 = vld [vmem:[#allocation5 + $0x1d0] sm:$0xff]
        %v310 = vld [vmem:[#allocation5 + $0x1d8] sm:$0xff]
        %v311 = vld [vmem:[#allocation5 + $0x1e0] sm:$0xff]
        %v312 = vld [vmem:[#allocation5 + $0x1e8] sm:$0xff]
        %v313 = vld [vmem:[#allocation5 + $0x1f0] sm:$0xff]
        %v314 = vld [vmem:[#allocation5 + $0x1f8] sm:$0xff]
        %315 = vmatprep.subr.mxu0 %v252
        %316 = vmatpush1.msra.mxu0 %v251
        %317 = vmatprep.subr.mxu0 %v254
        %318 = vmatpush1.msra.mxu0 %v253
        %319 = vmatprep.subr.mxu0 %v256
        %320 = vmatpush1.msra.mxu0 %v255
        %321 = vmatprep.subr.mxu0 %v258
        %322 = vmatpush1.msra.mxu0 %v257
        %323 = vmatprep.subr.mxu0 %v260
        %324 = vmatpush1.msra.mxu0 %v259
        %325 = vmatprep.subr.mxu0 %v262
        %326 = vmatpush1.msra.mxu0 %v261
        %327 = vmatprep.subr.mxu0 %v264
        %328 = vmatpush1.msra.mxu0 %v263
        %329 = vmatprep.subr.mxu0 %v266
        %330 = vmatpush1.msra.mxu0 %v265
        %331 = vmatprep.subr.mxu0 %v268
        %332 = vmatpush1.msra.mxu0 %v267
        %333 = vmatprep.subr.mxu0 %v270
        %334 = vmatpush1.msra.mxu0 %v269
        %335 = vmatprep.subr.mxu0 %v272
        %336 = vmatpush1.msra.mxu0 %v271
        %337 = vmatprep.subr.mxu0 %v274
        %338 = vmatpush1.msra.mxu0 %v273
        %339 = vmatprep.subr.mxu0 %v276
        %340 = vmatpush1.msra.mxu0 %v275
        %341 = vmatprep.subr.mxu0 %v278
        %342 = vmatpush1.msra.mxu0 %v277
        %343 = vmatprep.subr.mxu0 %v280
        %344 = vmatpush1.msra.mxu0 %v279
        %345 = vmatprep.subr.mxu0 %v282
        %346 = vmatpush1.msra.mxu0 %v281
        %347 = vmatprep.subr.mxu0 %v284
        %348 = vmatpush1.msra.mxu0 %v283
        %349 = vmatprep.subr.mxu0 %v286
        %350 = vmatpush1.msra.mxu0 %v285
        %351 = vmatprep.subr.mxu0 %v288
        %352 = vmatpush1.msra.mxu0 %v287
        %353 = vmatprep.subr.mxu0 %v290
        %354 = vmatpush1.msra.mxu0 %v289
        %355 = vmatprep.subr.mxu0 %v292
        %356 = vmatpush1.msra.mxu0 %v291
        %357 = vmatprep.subr.mxu0 %v294
        %358 = vmatpush1.msra.mxu0 %v293
        %359 = vmatprep.subr.mxu0 %v296
        %360 = vmatpush1.msra.mxu0 %v295
        %361 = vmatprep.subr.mxu0 %v298
        %362 = vmatpush1.msra.mxu0 %v297
        %363 = vmatprep.subr.mxu0 %v300
        %364 = vmatpush1.msra.mxu0 %v299
        %365 = vmatprep.subr.mxu0 %v302
        %366 = vmatpush1.msra.mxu0 %v301
        %367 = vmatprep.subr.mxu0 %v304
        %368 = vmatpush1.msra.mxu0 %v303
        %369 = vmatprep.subr.mxu0 %v306
        %370 = vmatpush1.msra.mxu0 %v305
        %371 = vmatprep.subr.mxu0 %v308
        %372 = vmatpush1.msra.mxu0 %v307
        %373 = vmatprep.subr.mxu0 %v310
        %374 = vmatpush1.msra.mxu0 %v309
        %375 = vmatprep.subr.mxu0 %v312
        %376 = vmatpush1.msra.mxu0 %v311
        %377 = vmatprep.subr.mxu0 %v314
        %378 = vmatpush1.msra.mxu0 %v313
        %379 = vmatprep.mubr.f32.mxu0 %v248
        %380 = vmatmul.mubr.f32.gmra.mrb[0].mxu0 %v247
        %v381 = vpop.f32.mrb[0].mxu0
        %v382 = vadd.f32 0.0, %v381
        %v383 = vpop.f32.mrb[0].mxu0
        %v384 = vadd.f32 0.0, %v383
        %385 = vmatprep.mubr.f32.mxu0 %v250
        %386 = vmatmul.mubr.f32.gmra.mrb[0].mxu0 %v249
        %v387 = vpop.f32.mrb[0].mxu0
        %v388 = vadd.f32 0.0, %v387
        %v389 = vpop.f32.mrb[0].mxu0
        %v390 = vadd.f32 0.0, %v389
        %391 = vdwg.mxu0
        %v392 = vld [vmem:[#allocation7] sm:$0xff]
        %v393 = vld [vmem:[#allocation7 + $0x8] sm:$0xff]
        %v394 = vld [vmem:[%s3] sm:$0x3]
        %v396 = vlaneseq
        %v397 = vshrl.u32 %v396, 7
        %v398 = vsub.s32 0, %v397
        %v399 = vrot.slane %v394, %v398
        %v400 = vlaneseq
        %v401 = vshrl.u32 %v400, 7
        %v402 = vsub.s32 1, %v401
        %v403 = vrot.slane %v394, %v402
        %vm406 = vcmask 130048
        %v408 = vsel %vm406, %v392, 0
        %v411 = vsel %vm406, %v393, 0
        %413 = vmatprep.subr.mxu0 %v384
        %414 = vmatpush1.msra.mxu0 %v382
        %415 = vmatprep.subr.mxu0 %v390
        %416 = vmatpush1.msra.mxu0 %v388
        %417 = vmatprep.subr.mxu0 0.0
        %418 = vmatpush1.msra.mxu0 0.0
        %419 = vmatprep.subr.mxu0 0.0
        %420 = vmatpush1.msra.mxu0 0.0
        %421 = vmatprep.subr.mxu0 0.0
        %422 = vmatpush1.msra.mxu0 0.0
        %423 = vmatprep.subr.mxu0 0.0
        %424 = vmatpush1.msra.mxu0 0.0
        %425 = vmatprep.subr.mxu0 0.0
        %426 = vmatpush1.msra.mxu0 0.0
        %427 = vmatprep.subr.mxu0 0.0
        %428 = vmatpush1.msra.mxu0 0.0
        %429 = vmatprep.subr.mxu0 0.0
        %430 = vmatpush1.msra.mxu0 0.0
        %431 = vmatprep.subr.mxu0 0.0
        %432 = vmatpush1.msra.mxu0 0.0
        %433 = vmatprep.subr.mxu0 0.0
        %434 = vmatpush1.msra.mxu0 0.0
        %435 = vmatprep.subr.mxu0 0.0
        %436 = vmatpush1.msra.mxu0 0.0
        %437 = vmatprep.subr.mxu0 0.0
        %438 = vmatpush1.msra.mxu0 0.0
        %439 = vmatprep.subr.mxu0 0.0
        %440 = vmatpush1.msra.mxu0 0.0
        %441 = vmatprep.subr.mxu0 0.0
        %442 = vmatpush1.msra.mxu0 0.0
        %443 = vmatprep.subr.mxu0 0.0
        %444 = vmatpush1.msra.mxu0 0.0
        %445 = vmatprep.subr.mxu0 0.0
        %446 = vmatpush1.msra.mxu0 0.0
        %447 = vmatprep.subr.mxu0 0.0
        %448 = vmatpush1.msra.mxu0 0.0
        %449 = vmatprep.subr.mxu0 0.0
        %450 = vmatpush1.msra.mxu0 0.0
        %451 = vmatprep.subr.mxu0 0.0
        %452 = vmatpush1.msra.mxu0 0.0
        %453 = vmatprep.subr.mxu0 0.0
        %454 = vmatpush1.msra.mxu0 0.0
        %455 = vmatprep.subr.mxu0 0.0
        %456 = vmatpush1.msra.mxu0 0.0
        %457 = vmatprep.subr.mxu0 0.0
        %458 = vmatpush1.msra.mxu0 0.0
        %459 = vmatprep.subr.mxu0 0.0
        %460 = vmatpush1.msra.mxu0 0.0
        %461 = vmatprep.subr.mxu0 0.0
        %462 = vmatpush1.msra.mxu0 0.0
        %463 = vmatprep.subr.mxu0 0.0
        %464 = vmatpush1.msra.mxu0 0.0
        %465 = vmatprep.subr.mxu0 0.0
        %466 = vmatpush1.msra.mxu0 0.0
        %467 = vmatprep.subr.mxu0 0.0
        %468 = vmatpush1.msra.mxu0 0.0
        %469 = vmatprep.subr.mxu0 0.0
        %470 = vmatpush1.msra.mxu0 0.0
        %471 = vmatprep.subr.mxu0 0.0
        %472 = vmatpush1.msra.mxu0 0.0
        %473 = vmatprep.subr.mxu0 0.0
        %474 = vmatpush1.msra.mxu0 0.0
        %475 = vmatprep.subr.mxu0 0.0
        %476 = vmatpush1.msra.mxu0 0.0
        %477 = vmatprep.mubr.f32.mxu0 0.0
        %478 = vmatmul.mubr.f32.gmra.mrb[0].mxu0 %v408
        %v479 = vpop.f32.mrb[0].mxu0
        %v480 = vadd.f32 %v399, %v479
        %v481 = vpop.f32.mrb[0].mxu0
        %v482 = vadd.f32 %v403, %v481
        %483 = vmatprep.mubr.f32.mxu0 0.0
        %484 = vmatmul.mubr.f32.gmra.mrb[0].mxu0 %v411
        %v485 = vpop.f32.mrb[0].mxu0
        %v486 = vadd.f32 %v399, %v485
        %v487 = vpop.f32.mrb[0].mxu0
        %v488 = vadd.f32 %v403, %v487
        %489 = vdwg.mxu0
        %490 = vst [vmem:[%s244] sm:$0xff] %v480
        %491 = vst [vmem:[%s244 + $0x8] sm:$0xff] %v482
        %492 = vst [vmem:[%s244 + $0x10] sm:$0xff] %v486
        %493 = vst [vmem:[%s244 + $0x18] sm:$0xff] %v488
        %s494 = sand.u32 %s119, 1
        %s495 = scalar_lea.sflag [#allocation4], %s494
        %s496 = sand.u32 %s119, 1
        %s497 = smul.addr %s496, 32
        %s498 = scalar_lea.vmem [#allocation8], %s497
        // Predicated region
        $region49: #{tpu_custom_call.1} parent=35 // pred_check
          %p499 = pneg %p129
        $region50: #{tpu_custom_call.1} parent=35 // pred_check_branch
          %501 = sbr.rel (%p499) target = $region52
        $region51: #{tpu_custom_call.1} parent=35 // pred_region
          %s502 = smul.u32 2, %s22
          %s504 = ssub.s32 512, 512
          %505 = vsyncadd %s495, %s504
          %s506 = smul.addr %s502, 128
          %s507 = scalar_lea.hbm %s4, %s506
          %s508 = sshll.u32 %s498, 4
          %s509 = int_to_ptr.vmem [resolvable:$true] %s508
          %514 = dma.vmem_to_hbm [thread:$0]  %s509, 512, %s507, %s495, 256, 512, 16
        $region52: #{tpu_custom_call.1} parent=35 // pred_fallthru
          _
      $region36: #{tpu_custom_call.1} parent=5 // pred_fallthru
        _
      %p515 = scmp.le.s32.totalorder 2, %s17
      // Predicated region
      $region53: #{tpu_custom_call.1} parent=5 // pred_check
        %p516 = pneg %p515
      $region54: #{tpu_custom_call.1} parent=5 // pred_check_branch
        %518 = sbr.rel (%p516) target = $region56
      $region55: #{tpu_custom_call.1} parent=5 // pred_region
        %s519 = ssub.s32 %s17, 2
        // Predicated region
        $region57: #{tpu_custom_call.1} parent=55 // pred_check
          %p520 = pneg %p135
        $region58: #{tpu_custom_call.1} parent=55 // pred_check_branch
          %522 = sbr.rel (%p520) target = $region60
        $region59: #{tpu_custom_call.1} parent=55 // pred_region
          %s523 = sand.u32 %s120, 1
          %s524 = scalar_lea.sflag [#allocation4], %s523
          %s525 = sand.u32 %s120, 1
          %s526 = smul.addr %s525, 32
          %s527 = scalar_lea.vmem [#allocation8], %s526
          %528 = dma.done %s524, 512
        $region60: #{tpu_custom_call.1} parent=55 // pred_fallthru
          _
      $region56: #{tpu_custom_call.1} parent=5 // pred_fallthru
        _
    $region6: #{tpu_custom_call.1} parent=1 // loop_footer
      %s21 = sadd.s32 1, %s17
    $region7: #{tpu_custom_call.1} parent=1 // loop_footer_branch
      %16 = sbr.rel target = $region3
    $region8: #{tpu_custom_call.1} parent=1 // loop_exit
      _
    %529 = vsyncpa [#allocation3], 1
    %s530 = scalar_lea.sflag [#allocation3], 1
    %531 = vsyncpa %s530, 1
    %532 = vsyncpa [#allocation6], 1
    %533 = vsyncpa [#allocation4], 1
    %s534 = scalar_lea.sflag [#allocation4], 1
    %535 = vsyncpa %s534, 1

</llo_original>
